<compile_context>
chip_gen: v6e
topology: v6e:2x2x1
jax: 0.10.0
libtpu: 0.0.40
codegen_flags: <defaults>
</compile_context>

<pallas_src>
import functools
import math

import jax
import jax.numpy as jnp
from jax.experimental import pallas as pl
from jax.experimental.pallas import tpu as pltpu

_CHUNK_MAX = 2048          # class-axis chunk (lanes); bounds in-kernel f32 temps
_STATIC_CHUNK_LOOP = 8     # <= this many chunks -> fully static (unrolled) slices


def _round_up(x, m):
    return ((x + m - 1) // m) * m


def _captioning_loss_kernel(logits_ref, target_ref, out_ref, *, eps, n_rows, mean_only):
    """One row tile. Online (flash-style) LSE over class chunks keeps the live
    f32 working set at (TN, chunk) instead of (TN, C)."""
    tn, c = logits_ref.shape
    tgt = target_ref[...]                                   # (TN, 1) int32
    use_smoothing = eps > 0.0

    chunk = min(c, _CHUNK_MAX)
    nc_full = c // chunk
    tail = c - nc_full * chunk

    def update(x_native, col0, carry):
        m, s, tsum, xsum = carry
        x = x_native.astype(jnp.float32)                    # chunk-bounded f32 temp
        w = x_native.shape[1]
        col = col0 + jax.lax.broadcasted_iota(jnp.int32, (1, w), 1)   # (1, W), bcast cmp
        m_new = jnp.maximum(m, jnp.max(x, axis=1, keepdims=True))
        s = s * jnp.exp(m - m_new) + jnp.sum(jnp.exp(x - m_new), axis=1, keepdims=True)
        tsum = tsum + jnp.sum(jnp.where(col == tgt, x, 0.0), axis=1, keepdims=True)
        if use_smoothing:
            xsum = xsum + jnp.sum(x, axis=1, keepdims=True)
        return (m_new, s, tsum, xsum)

    zeros = jnp.zeros((tn, 1), jnp.float32)
    carry = (jnp.full((tn, 1), -jnp.inf, jnp.float32), zeros, zeros, zeros)

    if nc_full > 0:
        if nc_full <= _STATIC_CHUNK_LOOP:
            for j in range(nc_full):                        # fully static slices
                carry = update(logits_ref[:, j * chunk:(j + 1) * chunk], j * chunk, carry)
        else:                                               # huge vocab: dynamic, aligned
            def body(j, carry):
                start = pl.multiple_of(j * chunk, chunk)
                return update(logits_ref[:, pl.ds(start, chunk)], j * chunk, carry)
            carry = jax.lax.fori_loop(0, nc_full, body, carry, unroll=8)
    if tail > 0:                                            # static ragged tail chunk
        carry = update(logits_ref[:, nc_full * chunk:], nc_full * chunk, carry)

    m, s, tsum, xsum = carry
    lse = jnp.log(s) + m                                    # (TN, 1) row log-sum-exp

    if use_smoothing:
        on_val = 1.0 - eps
        off_val = eps / (c - 1)
        const = (1.0 - eps) * math.log(1.0 - eps) + eps * math.log(eps / (c - 1))
        loss = const + lse - off_val * xsum - (on_val - off_val) * tsum
    else:                                                   # eps == 0 -> plain CE
        loss = lse - tsum

    if mean_only:
        # Tile-local partial sum; mask rows past N (ragged last tile) before summing.
        row = jax.lax.broadcasted_iota(jnp.int32, (tn, 1), 0)
        valid = (pl.program_id(0) * tn + row) < n_rows
        partial = jnp.sum(jnp.where(valid, loss, 0.0), axis=0, keepdims=True)   # (1, 1)
        out_ref[...] = jnp.broadcast_to(partial, (8, 128))  # one aligned, unmasked vst
    else:
        # Per-row losses (drop-worst path); lane-replicated -> full unmasked vst.
        out_ref[...] = jnp.broadcast_to(loss, (tn, 128))


def _vmem_capacity_bytes():
    try:
        cap = getattr(pltpu.get_tpu_info(), "vmem_capacity_bytes", None)
        if cap:
            return int(cap)
    except Exception:
        pass
    return 64 * 1024 * 1024        # conservative fallback: v7x per-TensorCore VMEM


def _choose_row_tile(n, c, in_itemsize, budget_bytes):
    """Largest row tile whose whole pipelined working set fits the budget:
    2 double-buffered native-dtype input blocks + chunk-bounded f32 temps
    (cast + exp + select) + per-row output, rounded to the dtype sublane pack."""
    sub = max(8, 32 // in_itemsize)                  # f32 -> 8, bf16 -> 16, int8 -> 32
    chunk = min(c, _CHUNK_MAX)
    per_row = c * 2 * in_itemsize + chunk * 12 + 2 * 128 * 4 + 64
    tn = max(sub, (budget_bytes // per_row // sub) * sub)
    tn = min(tn, _round_up(n, sub))
    if tn >= n and n > sub:        # >=2 tiles so the parallel axis feeds both v7x TCs
        tn = min(tn, _round_up((n + 1) // 2, sub))
    return int(tn)


def bert_captioning_loss(logits, target, *, label_smoothing=0.0,
                         drop_worst_ratio=0.0, drop_worst_after=0, iteration=1):
    """Replicates BertCaptioningLoss.forward for one call (iteration = self.iter)."""
    n, c = logits.shape
    eps = float(label_smoothing)
    if eps > 0.0:
        assert c > 1, "label smoothing requires n_class > 1"
    in_itemsize = jnp.dtype(logits.dtype).itemsize

    vmem_cap = _vmem_capacity_bytes()
    tn = _choose_row_tile(n, c, in_itemsize, budget_bytes=int(vmem_cap * 0.6))
    num_tiles = pl.cdiv(n, tn)     # ragged last block — no wrapper-side pad of logits

    target2d = target.reshape(n, 1).astype(jnp.int32)
    need_per_row = drop_worst_ratio > 0 and iteration > drop_worst_after

    kernel = functools.partial(_captioning_loss_kernel, eps=eps, n_rows=n,
                               mean_only=not need_per_row)

    if need_per_row:
        out_shape = jax.ShapeDtypeStruct((n, 128), jnp.float32)
        out_spec = pl.BlockSpec((tn, 128), lambda i: (i, 0))
        out_bytes = n * 128 * 4
    else:
        out_shape = jax.ShapeDtypeStruct((8, 128 * num_tiles), jnp.float32)
        out_spec = pl.BlockSpec((8, 128), lambda i: (0, i))
        out_bytes = 8 * 128 * num_tiles * 4

    cost = pl.CostEstimate(
        flops=int(8 * n * c),
        transcendentals=int(n * c + 2 * n),
        bytes_accessed=int(n * c * in_itemsize + n * 4 + out_bytes),
    )

    out = pl.pallas_call(
        kernel,
        out_shape=out_shape,
        grid=(num_tiles,),
        in_specs=[
            pl.BlockSpec((tn, c), lambda i: (i, 0)),     # logits, native dtype (bf16 ok)
            pl.BlockSpec((tn, 1), lambda i: (i, 0)),     # target indices
        ],
        out_specs=out_spec,
        compiler_params=pltpu.CompilerParams(
            dimension_semantics=("parallel",),
            vmem_limit_bytes=int(vmem_cap * 0.75),
        ),
        cost_estimate=cost,
    )(logits, target2d)

    if need_per_row:
        per_row = out[:n, 0]
        # drop-worst: keep the k smallest losses — data-dependent top-k, JAX glue.
        k = int(n * (1 - drop_worst_ratio))
        per_row = -jax.lax.top_k(-per_row, k)[0]
        return jnp.mean(per_row)
    # mean-only: each tile wrote its partial sum replicated over an (8, 128) block.
    return jnp.sum(out) / (8.0 * 128.0 * n)


def _reference(logits, target, eps, drop_worst_ratio=0.0):
    """Pure-JAX reference of the PyTorch forward."""
    n, c = logits.shape
    one_hot = jax.nn.one_hot(target, c, dtype=jnp.float32)
    t = one_hot * (1 - eps) + (1 - one_hot) * eps / (c - 1)
    log_prb = jax.nn.log_softmax(logits.astype(jnp.float32), axis=1)
    t_log_t = jnp.where(t > 0, t * jnp.log(jnp.where(t > 0, t, 1.0)), 0.0)
    kl = jnp.sum(t_log_t - t * log_prb, axis=1)
    if drop_worst_ratio > 0:
        k = int(n * (1 - drop_worst_ratio))
        kl = -jax.lax.top_k(-kl, k)[0]
    return jnp.mean(kl)


if __name__ == "__main__":
    key = jax.random.PRNGKey(0)
    ks = jax.random.split(key, 6)

    # 1) label smoothing, small vocab.
    N, C = 16, 256
    logits = jax.random.normal(ks[0], (N, C), dtype=jnp.float32)
    target = jax.random.randint(ks[1], (N,), 0, C, dtype=jnp.int32)
    loss = jax.block_until_ready(bert_captioning_loss(logits, target, label_smoothing=0.1))
    ref = _reference(logits, target, 0.1)
    assert jnp.allclose(loss, ref, rtol=1e-5, atol=1e-5), (loss, ref)

    # 2) eps == 0 path (plain cross-entropy closed form).
    loss0 = jax.block_until_ready(bert_captioning_loss(logits, target, label_smoothing=0.0))
    ref0 = _reference(logits, target, 0.0)
    assert jnp.allclose(loss0, ref0, rtol=1e-5, atol=1e-5), (loss0, ref0)

    # 3) ragged rows (N not a multiple of the row tile) — no wrapper-side pad.
    N2, C2 = 13, 384
    logits2 = jax.random.normal(ks[2], (N2, C2), dtype=jnp.float32)
    target2 = jax.random.randint(ks[3], (N2,), 0, C2, dtype=jnp.int32)
    loss2 = jax.block_until_ready(bert_captioning_loss(logits2, target2, label_smoothing=0.1))
    ref2 = _reference(logits2, target2, 0.1)
    assert jnp.allclose(loss2, ref2, rtol=1e-5, atol=1e-5), (loss2, ref2)

    # 4) class-axis chunking path (C > chunk, with a ragged tail chunk).
    N3, C3 = 16, 2 * _CHUNK_MAX + 128
    logits3 = jax.random.normal(ks[4], (N3, C3), dtype=jnp.float32)
    target3 = jax.random.randint(ks[5], (N3,), 0, C3, dtype=jnp.int32)
    loss3 = jax.block_until_ready(bert_captioning_loss(logits3, target3, label_smoothing=0.1))
    ref3 = _reference(logits3, target3, 0.1)
    assert jnp.allclose(loss3, ref3, rtol=1e-4, atol=1e-4), (loss3, ref3)

    # 5) drop-worst path (per-row losses + top-k smallest, then mean).
    loss4 = jax.block_until_ready(
        bert_captioning_loss(logits, target, label_smoothing=0.1,
                             drop_worst_ratio=0.25, drop_worst_after=0, iteration=1))
    ref4 = _reference(logits, target, 0.1, drop_worst_ratio=0.25)
    assert jnp.allclose(loss4, ref4, rtol=1e-5, atol=1e-5), (loss4, ref4)

    # 6) bf16 logits stream straight into the kernel (no wrapper upcast).
    logits_bf = logits.astype(jnp.bfloat16)
    loss5 = jax.block_until_ready(
        bert_captioning_loss(logits_bf, target, label_smoothing=0.1))
    ref5 = _reference(logits_bf, target, 0.1)
    assert jnp.allclose(loss5, ref5, rtol=1e-4, atol=1e-4), (loss5, ref5)

    print("KERNEL_OK")
</pallas_src>

<mosaic_0001>
module attributes {stable_mosaic.version = 11 : i64} {
  func.func @_captioning_loss_kernel(%arg0: i32, %arg1: memref<8x256xf32, #tpu.memory_space<vmem>>, %arg2: memref<8x1xi32, #tpu.memory_space<vmem>>, %arg3: memref<8x128xf32, #tpu.memory_space<vmem>>) attributes {dimension_semantics = [#tpu.dimension_semantics<parallel>], iteration_bounds = array<i64: 2>, scalar_prefetch = 0 : i64, scratch_operands = 0 : i64, tpu.core_type = #tpu.core_type<tc>, window_params = [{transform_indices = @transform_0, window_bounds = array<i64: 8, 256>}, {transform_indices = @transform_1, window_bounds = array<i64: 8, 1>}, {transform_indices = @transform_2, window_bounds = array<i64: 8, 128>}]} {
    %c0 = arith.constant 0 : index
    %c0_0 = arith.constant 0 : index
    %0 = vector.load %arg2[%c0, %c0_0] : memref<8x1xi32, #tpu.memory_space<vmem>>, vector<8x1xi32>
    %cst = arith.constant 0.000000e+00 : f32
    %1 = vector.broadcast %cst : f32 to vector<8x1xf32>
    %cst_1 = arith.constant 0xFF800000 : f32
    %2 = vector.broadcast %cst_1 : f32 to vector<8x1xf32>
    %c0_2 = arith.constant 0 : index
    %c0_3 = arith.constant 0 : index
    %3 = vector.load %arg1[%c0_2, %c0_3] : memref<8x256xf32, #tpu.memory_space<vmem>>, vector<8x256xf32>
    %4 = tpu.iota {dimensions = array<i32: 1>} : vector<1x256xi32>
    %c0_i32 = arith.constant 0 : i32
    %5 = vector.broadcast %c0_i32 : i32 to vector<1x256xi32>
    %6 = arith.addi %5, %4 : vector<1x256xi32>
    %cst_4 = arith.constant dense<0xFF800000> : vector<8xf32>
    %7 = vector.multi_reduction <maximumf>, %3, %cst_4 [1] : vector<8x256xf32> to vector<8xf32>
    %8 = vector.shape_cast %7 : vector<8xf32> to vector<8x1xf32>
    %9 = arith.maximumf %2, %8 : vector<8x1xf32>
    %10 = arith.subf %2, %9 : vector<8x1xf32>
    %11 = math.exp %10 : vector<8x1xf32>
    %12 = arith.mulf %1, %11 : vector<8x1xf32>
    %13 = vector.broadcast %9 : vector<8x1xf32> to vector<8x256xf32>
    %14 = arith.subf %3, %13 : vector<8x256xf32>
    %15 = math.exp %14 : vector<8x256xf32>
    %cst_5 = arith.constant dense<0.000000e+00> : vector<8xf32>
    %16 = vector.multi_reduction <add>, %15, %cst_5 [1] : vector<8x256xf32> to vector<8xf32>
    %17 = vector.shape_cast %16 : vector<8xf32> to vector<8x1xf32>
    %18 = arith.addf %12, %17 : vector<8x1xf32>
    %19 = vector.broadcast %6 : vector<1x256xi32> to vector<8x256xi32>
    %20 = vector.broadcast %0 : vector<8x1xi32> to vector<8x256xi32>
    %21 = arith.cmpi eq, %19, %20 : vector<8x256xi32>
    %cst_6 = arith.constant 0.000000e+00 : f32
    %22 = vector.broadcast %cst_6 : f32 to vector<8x256xf32>
    %23 = arith.select %21, %3, %22 : vector<8x256xi1>, vector<8x256xf32>
    %cst_7 = arith.constant dense<0.000000e+00> : vector<8xf32>
    %24 = vector.multi_reduction <add>, %23, %cst_7 [1] : vector<8x256xf32> to vector<8xf32>
    %25 = vector.shape_cast %24 : vector<8xf32> to vector<8x1xf32>
    %26 = arith.addf %1, %25 : vector<8x1xf32>
    %cst_8 = arith.constant dense<0.000000e+00> : vector<8xf32>
    %27 = vector.multi_reduction <add>, %3, %cst_8 [1] : vector<8x256xf32> to vector<8xf32>
    %28 = vector.shape_cast %27 : vector<8xf32> to vector<8x1xf32>
    %29 = arith.addf %1, %28 : vector<8x1xf32>
    %30 = math.log %18 : vector<8x1xf32>
    %31 = arith.addf %30, %9 : vector<8x1xf32>
    %cst_9 = arith.constant -0.879209339 : f32
    %32 = vector.broadcast %cst_9 : f32 to vector<8x1xf32>
    %33 = arith.addf %32, %31 : vector<8x1xf32>
    %cst_10 = arith.constant 3.92156857E-4 : f32
    %34 = vector.broadcast %cst_10 : f32 to vector<8x1xf32>
    %35 = arith.mulf %34, %29 : vector<8x1xf32>
    %36 = arith.subf %33, %35 : vector<8x1xf32>
    %cst_11 = arith.constant 0.899607837 : f32
    %37 = vector.broadcast %cst_11 : f32 to vector<8x1xf32>
    %38 = arith.mulf %37, %26 : vector<8x1xf32>
    %39 = arith.subf %36, %38 : vector<8x1xf32>
    %40 = tpu.iota {dimensions = array<i32: 0>} : vector<8x1xi32>
    %c8_i32 = arith.constant 8 : i32
    %41 = arith.muli %arg0, %c8_i32 : i32
    %42 = vector.broadcast %41 : i32 to vector<8x1xi32>
    %43 = arith.addi %42, %40 : vector<8x1xi32>
    %c16_i32 = arith.constant 16 : i32
    %44 = vector.broadcast %c16_i32 : i32 to vector<8x1xi32>
    %45 = arith.cmpi slt, %43, %44 : vector<8x1xi32>
    %cst_12 = arith.constant 0.000000e+00 : f32
    %46 = vector.broadcast %cst_12 : f32 to vector<8x1xf32>
    %47 = arith.select %45, %39, %46 : vector<8x1xi1>, vector<8x1xf32>
    %cst_13 = arith.constant dense<0.000000e+00> : vector<1xf32>
    %48 = vector.multi_reduction <add>, %47, %cst_13 [0] : vector<8x1xf32> to vector<1xf32>
    %49 = vector.shape_cast %48 : vector<1xf32> to vector<1x1xf32>
    %50 = vector.shape_cast %49 : vector<1x1xf32> to vector<1x1xf32>
    %51 = vector.broadcast %50 : vector<1x1xf32> to vector<8x128xf32>
    %c0_14 = arith.constant 0 : index
    %c0_15 = arith.constant 0 : index
    %52 = vector.load %arg3[%c0_14, %c0_15] : memref<8x128xf32, #tpu.memory_space<vmem>>, vector<8x128xf32>
    tpu.vector_store %arg3[%c0_14, %c0_15], %51 {strides = array<i32>} : memref<8x128xf32, #tpu.memory_space<vmem>>, vector<8x128xf32>,
    return
  }
  func.func @transform_0(%arg0: i32) -> (i32, i32) {
    %c0_i32 = arith.constant 0 : i32
    %c0_i32_0 = arith.constant 0 : i32
    return %arg0, %c0_i32 : i32, i32
  }
  func.func @transform_1(%arg0: i32) -> (i32, i32) {
    %c0_i32 = arith.constant 0 : i32
    %c0_i32_0 = arith.constant 0 : i32
    return %arg0, %c0_i32 : i32, i32
  }
  func.func @transform_2(%arg0: i32) -> (i32, i32) {
    %c0_i32 = arith.constant 0 : i32
    %c0_i32_0 = arith.constant 0 : i32
    return %c0_i32, %arg0 : i32, i32
  }
}

</mosaic_0001>

<llo_original>
// kernel: tpu_custom_call.1
$region0: #{tpu_custom_call.1}
  #allocation0 [shape = 'u32[]', space=smem, size = 0x4, offset = 0x4, fixed_abs, tag = 'smem constant byte address 0x4 - core index']
  #allocation1 [shape = 'u32[144,128]{1,0:T(1,128)}', space=vmem, size = 0x12000, scoped, tag = 'internal scratch']
  %s0 = inlined_call_operand.hbm [shape: f32[16,256], index: 0, kind: input, shape index: {}]
  %s1 = inlined_call_operand.vmem [shape: s32[16,1], index: 1, kind: input, shape index: {}]
  %s2 = inlined_call_operand.hbm [shape: f32[8,256], index: 2, kind: output, shape index: {}]
  %s3 = sld [smem:[#allocation0]]
  $region45: #{tpu_custom_call.1} parent=0
    _
  %s5 = ssub.s32 1, %s3
  %s6 = scalar_select 0, %s5, %s3
  $region1: #{tpu_custom_call.1} parent=0
    #allocation2 [shape = 'u8[16384]{0}', space=vmem, size = 0x4000, scoped, tag = 'input window, operand 0']
    #allocation3 [shape = 's32[2]{0}', space=sflag, size = 0x8, scoped, tag = 'scoped memory for tpu_custom_call.1']
    #allocation4 [shape = 's32[2]{0}', space=sflag, size = 0x8, scoped, tag = 'scoped memory for tpu_custom_call.1']
    #allocation5 [shape = 'u8[8192]{0}', space=vmem, size = 0x2000, scoped, tag = 'output window, operand 0']
    %7 = vsyncpa [#allocation3], 0
    %s8 = scalar_lea.sflag [#allocation3], 1
    %9 = vsyncpa %s8, 0
    %10 = vsyncpa [#allocation4], 0
    %s11 = scalar_lea.sflag [#allocation4], 1
    %12 = vsyncpa %s11, 0
    loop: start=0, step=1, limit=4
    $region2: #{tpu_custom_call.1} parent=1 // loop_pre_header
      _
    $region3: #{tpu_custom_call.1} parent=1 // loop_header
      %s14 = sphi 0, %s18
      %p15 = scmp.ge.s32.totalorder %s14, 4
      %s24 = sphi 0, %s26
      %s27 = sphi 0, %s24
      %s28 = sphi 0, %s27
      %s44 = sphi 0, %s28
      %s50 = sphi 0, %s52
      %s53 = sphi 0, %s50
      %s54 = sphi 0, %s53
      %s70 = sphi 0, %s54
      %s76 = sphi 0, %s78
      %s79 = sphi 0, %s76
      %s80 = sphi 0, %s79
      %s96 = sphi 0, %s80
    $region4: #{tpu_custom_call.1} parent=1 // loop_header_branch
      %17 = sbr.rel (%p15) target = $region8
    $region5: #{tpu_custom_call.1} parent=1 // loop_body
      %s19 = ssub.s32 %s14, 1
      %s20 = ssub.s32 %s14, 2
      %s21 = sadd.s32 %s14, 1
      %s22 = ssub.s32 %s14, %s21
      %p23 = scmp.eq.s32.totalorder %s22, 0
      %s25 = sadd.s32 %s24, 1
      %s26 = scalar_select %p23, %s24, %s25
      %p29 = pneg %p23
      %p30 = scmp.eq.s32.totalorder %s14, 1
      %p31 = por %p29, %p30
      %p32 = scmp.ne.s32.totalorder %s24, %s27
      %p33 = scmp.eq.s32.totalorder %s14, 0
      %p34 = por %p32, %p33
      %p35 = scmp.ne.s32.totalorder %s24, %s27
      %p36 = scmp.eq.s32.totalorder %s19, 1
      %p37 = por %p35, %p36
      %p38 = scmp.ne.s32.totalorder %s27, %s28
      %p39 = scmp.eq.s32.totalorder %s19, 0
      %p40 = por %p38, %p39
      %p41 = scmp.ne.s32.totalorder %s27, %s28
      %p42 = scmp.eq.s32.totalorder %s20, 1
      %p43 = por %p41, %p42
      %p45 = scmp.ne.s32.totalorder %s28, %s44
      %p46 = scmp.eq.s32.totalorder %s20, 0
      %p47 = por %p45, %p46
      %s48 = ssub.s32 %s14, %s21
      %p49 = scmp.eq.s32.totalorder %s48, 0
      %s51 = sadd.s32 %s50, 1
      %s52 = scalar_select %p49, %s50, %s51
      %p55 = pneg %p49
      %p56 = scmp.eq.s32.totalorder %s14, 1
      %p57 = por %p55, %p56
      %p58 = scmp.ne.s32.totalorder %s50, %s53
      %p59 = scmp.eq.s32.totalorder %s14, 0
      %p60 = por %p58, %p59
      %p61 = scmp.ne.s32.totalorder %s50, %s53
      %p62 = scmp.eq.s32.totalorder %s19, 1
      %p63 = por %p61, %p62
      %p64 = scmp.ne.s32.totalorder %s53, %s54
      %p65 = scmp.eq.s32.totalorder %s19, 0
      %p66 = por %p64, %p65
      %p67 = scmp.ne.s32.totalorder %s53, %s54
      %p68 = scmp.eq.s32.totalorder %s20, 1
      %p69 = por %p67, %p68
      %p71 = scmp.ne.s32.totalorder %s54, %s70
      %p72 = scmp.eq.s32.totalorder %s20, 0
      %p73 = por %p71, %p72
      %s74 = ssub.s32 %s14, %s21
      %p75 = scmp.eq.s32.totalorder %s74, 0
      %s77 = sadd.s32 %s76, 1
      %s78 = scalar_select %p75, %s76, %s77
      %p81 = pneg %p75
      %p82 = scmp.eq.s32.totalorder %s14, 1
      %p83 = por %p81, %p82
      %p84 = scmp.ne.s32.totalorder %s76, %s79
      %p85 = scmp.eq.s32.totalorder %s14, 0
      %p86 = por %p84, %p85
      %p87 = scmp.ne.s32.totalorder %s76, %s79
      %p88 = scmp.eq.s32.totalorder %s19, 1
      %p89 = por %p87, %p88
      %p90 = scmp.ne.s32.totalorder %s79, %s80
      %p91 = scmp.eq.s32.totalorder %s19, 0
      %p92 = por %p90, %p91
      %p93 = scmp.ne.s32.totalorder %s79, %s80
      %p94 = scmp.eq.s32.totalorder %s20, 1
      %p95 = por %p93, %p94
      %p97 = scmp.ne.s32.totalorder %s80, %s96
      %p98 = scmp.eq.s32.totalorder %s20, 0
      %p99 = por %p97, %p98
      %p100 = scmp.le.s32.totalorder 1, %s14
      %p101 = scmp.lt.s32.totalorder %s14, 3
      %p102 = pnand %p100, %p101
      %p103 = pneg %p102
      // Predicated region
      $region9: #{tpu_custom_call.1} parent=5 // pred_check
        _
      $region10: #{tpu_custom_call.1} parent=5 // pred_check_branch
        %105 = sbr.rel (%p102) target = $region12
      $region11: #{tpu_custom_call.1} parent=5 // pred_region
        %s106 = ssub.s32 %s14, 1
      $region12: #{tpu_custom_call.1} parent=5 // pred_fallthru
        _
      %p107 = scmp.lt.s32.totalorder %s14, 2
      // Predicated region
      $region13: #{tpu_custom_call.1} parent=5 // pred_check
        %p108 = pneg %p107
      $region14: #{tpu_custom_call.1} parent=5 // pred_check_branch
        %110 = sbr.rel (%p108) target = $region16
      $region15: #{tpu_custom_call.1} parent=5 // pred_region
        // Predicated region
        $region17: #{tpu_custom_call.1} parent=15 // pred_check
          %p111 = pneg %p34
        $region18: #{tpu_custom_call.1} parent=15 // pred_check_branch
          %113 = sbr.rel (%p111) target = $region20
        $region19: #{tpu_custom_call.1} parent=15 // pred_region
          %s114 = sand.u32 %s24, 1
          %s115 = scalar_lea.sflag [#allocation3], %s114
          %s116 = sand.u32 %s24, 1
          %s117 = smul.addr %s116, 16
          %s118 = scalar_lea.vmem [#allocation2], %s117
          %s120 = ssub.s32 256, 256
          %121 = vsyncadd %s115, %s120
          %s122 = smul.addr %s14, 2
          %s123 = smul.addr %s122, 128
          %s124 = scalar_lea.hbm %s0, %s123
          %s126 = sshll.u32 %s118, 4
          %s127 = int_to_ptr.vmem [resolvable:$true] %s126
          %129 = dma.hbm_to_vmem [thread:$0]  %s124, 256, %s127, %s115
        $region20: #{tpu_custom_call.1} parent=15 // pred_fallthru
          _
        // Predicated region
        $region21: #{tpu_custom_call.1} parent=15 // pred_check
          %p130 = pneg %p60
        $region22: #{tpu_custom_call.1} parent=15 // pred_check_branch
          %132 = sbr.rel (%p130) target = $region24
        $region23: #{tpu_custom_call.1} parent=15 // pred_region
          %p133 = scmp.lt.s32.totalorder %s14, 1
          %s134 = scalar_select %p133, %s14, 1
          %s135 = smul.addr %s134, 8
          %s136 = scalar_lea.vmem %s1, %s135
        $region24: #{tpu_custom_call.1} parent=15 // pred_fallthru
          _
      $region16: #{tpu_custom_call.1} parent=5 // pred_fallthru
        _
      %p137 = scmp.le.s32.totalorder 1, %s14
      %p138 = scmp.lt.s32.totalorder %s14, 3
      %p139 = pnand %p137, %p138
      %p140 = pneg %p139
      // Predicated region
      $region25: #{tpu_custom_call.1} parent=5 // pred_check
        _
      $region26: #{tpu_custom_call.1} parent=5 // pred_check_branch
        %142 = sbr.rel (%p139) target = $region28
      $region27: #{tpu_custom_call.1} parent=5 // pred_region
        %s143 = ssub.s32 %s14, 1
        %s144 = sand.u32 %s27, 1
        %s145 = scalar_lea.sflag [#allocation3], %s144
        %s146 = sand.u32 %s27, 1
        %s147 = smul.addr %s146, 16
        %s148 = scalar_lea.vmem [#allocation2], %s147
        // Predicated region
        $region29: #{tpu_custom_call.1} parent=27 // pred_check
          %p149 = pneg %p40
        $region30: #{tpu_custom_call.1} parent=27 // pred_check_branch
          %151 = sbr.rel (%p149) target = $region32
        $region31: #{tpu_custom_call.1} parent=27 // pred_region
          %152 = dma.done %s145, 256
        $region32: #{tpu_custom_call.1} parent=27 // pred_fallthru
          _
        %s153 = sand.u32 %s27, 1
        %s154 = scalar_lea.sflag [#allocation3], %s153
        %s155 = sand.u32 %s27, 1
        %s156 = smul.addr %s155, 16
        %s157 = scalar_lea.vmem [#allocation2], %s156
        %p158 = pneg %p40
        %p159 = pneg %p37
        %p160 = scmp.lt.s32.totalorder %s19, 1
        %s161 = scalar_select %p160, %s19, 1
        %s162 = smul.addr %s161, 8
        %s163 = scalar_lea.vmem %s1, %s162
        %p164 = pneg %p66
        %p165 = pneg %p63
        %p166 = pneg %p92
        %p167 = pneg %p89
        %s168 = sand.u32 %s79, 1
        %s169 = scalar_lea.sflag [#allocation4], %s168
        %s170 = sand.u32 %s79, 1
        %s171 = smul.addr %s170, 8
        %s172 = scalar_lea.vmem [#allocation5], %s171
        %p173 = scmp.lt.s32.totalorder %s19, 1
        %s174 = scalar_select %p173, %s19, 1
        %s175 = smul.addr %s174, 8
        %s176 = scalar_lea.vmem %s1, %s175
        %v177 = vld [vmem:[%s176] sm:$0xff]
        %v178 = vld [vmem:[%s148] sm:$0xff]
        %v179 = vld [vmem:[%s148 + $0x8] sm:$0xff]
        %v180 = vlaneseq
        %v181 = vand.u32 %v180, 127
        %v182 = vadd.s32 %v181, 128
        %v183 = vmax.f32 %v178, %v179
        %184 = vmax.xlane.f32.xlu0 %v183
        %v185 = vpop.xlane.xlu0 %184
        %v186 = vsub.f32 -inf, %v185
        %v187 = vmul.f32 %v186, 1.442695
        %v188 = vpow.pop %v187
        %v189 = vmul.f32 %v188, 0.0
        %v190 = vsub.f32 %v178, %v185
        %v191 = vsub.f32 %v179, %v185
        %v192 = vmul.f32 %v190, 1.442695
        %v193 = vpow.pop %v192
        %v194 = vmul.f32 %v191, 1.442695
        %v195 = vpow.pop %v194
        %v196 = vadd.f32 %v193, %v195
        %197 = vadd.xlane.f32.xlu0 %v196
        %v198 = vpop.xlane.xlu0 %197
        %v199 = vadd.f32 %v189, %v198
        %200 = vset.pattern.permute.xlu0 0
        %201 = vperm.xlu0 %200, %v177
        %v202 = vpop.permute.xlu0 %201
        %vm203 = vcmp.eq.s32.totalorder %v181, %v202
        %vm204 = vcmp.eq.s32.totalorder %v182, %v202
        %v205 = vsel %vm203, %v178, 0.0
        %v206 = vsel %vm204, %v179, 0.0
        %v207 = vadd.f32 %v205, %v206
        %208 = vadd.xlane.f32.xlu0 %v207
        %v209 = vpop.xlane.xlu0 %208
        %v210 = vadd.f32 %v209, 0.0
        %v211 = vadd.f32 %v178, %v179
        %212 = vadd.xlane.f32.xlu0 %v211
        %v213 = vpop.xlane.xlu0 %212
        %v214 = vadd.f32 %v213, 0.0
        %v215 = vlog2.pop %v199
        %v216 = vmul.f32 %v215, 0.6931472
        %v217 = vadd.f32 %v216, %v185
        %v218 = vadd.f32 %v217, -0.87920934
        %v219 = vmul.f32 %v214, 0.00039215686
        %v220 = vsub.f32 %v218, %v219
        %v221 = vmul.f32 %v210, 0.89960784
        %v222 = vsub.f32 %v220, %v221
        %v223 = vlaneseq
        %v224 = vshrl.u32 %v223, 7
        %s225 = smul.u32 %s19, 8
        %v226 = vstv %s225
        %v227 = vadd.s32 %v226, %v224
        %vm228 = vcmp.lt.s32.totalorder %v227, 16
        %v229 = vsel %vm228, %v222, 0.0
        %v230 = vrot.slane %v229, 4
        %v231 = vadd.f32 %v229, %v230
        %v232 = vrot.slane %v231, 2
        %v233 = vadd.f32 %v231, %v232
        %v234 = vrot.slane %v233, 1
        %v235 = vadd.f32 %v233, %v234
        %236 = vst [vmem:[%s172] sm:$0xff] %v235
        %s237 = sand.u32 %s79, 1
        %s238 = scalar_lea.sflag [#allocation4], %s237
        %s239 = sand.u32 %s79, 1
        %s240 = smul.addr %s239, 8
        %s241 = scalar_lea.vmem [#allocation5], %s240
        // Predicated region
        $region33: #{tpu_custom_call.1} parent=27 // pred_check
          %p242 = pneg %p89
        $region34: #{tpu_custom_call.1} parent=27 // pred_check_branch
          %244 = sbr.rel (%p242) target = $region36
        $region35: #{tpu_custom_call.1} parent=27 // pred_region
          %s246 = ssub.s32 128, 128
          %247 = vsyncadd %s238, %s246
          %s248 = smul.addr %s19, 128
          %s249 = scalar_lea.hbm %s2, %s248
          %s251 = sshll.u32 %s241, 4
          %s252 = int_to_ptr.vmem [resolvable:$true] %s251
          %254 = dma.vmem_to_hbm [thread:$0]  %s252, 128, %s249, %s238
        $region36: #{tpu_custom_call.1} parent=27 // pred_fallthru
          _
      $region28: #{tpu_custom_call.1} parent=5 // pred_fallthru
        _
      %p255 = scmp.le.s32.totalorder 2, %s14
      // Predicated region
      $region37: #{tpu_custom_call.1} parent=5 // pred_check
        %p256 = pneg %p255
      $region38: #{tpu_custom_call.1} parent=5 // pred_check_branch
        %258 = sbr.rel (%p256) target = $region40
      $region39: #{tpu_custom_call.1} parent=5 // pred_region
        %s259 = ssub.s32 %s14, 2
        // Predicated region
        $region41: #{tpu_custom_call.1} parent=39 // pred_check
          %p260 = pneg %p95
        $region42: #{tpu_custom_call.1} parent=39 // pred_check_branch
          %262 = sbr.rel (%p260) target = $region44
        $region43: #{tpu_custom_call.1} parent=39 // pred_region
          %s263 = sand.u32 %s80, 1
          %s264 = scalar_lea.sflag [#allocation4], %s263
          %s265 = sand.u32 %s80, 1
          %s266 = smul.addr %s265, 8
          %s267 = scalar_lea.vmem [#allocation5], %s266
          %268 = dma.done %s264, 128
        $region44: #{tpu_custom_call.1} parent=39 // pred_fallthru
          _
      $region40: #{tpu_custom_call.1} parent=5 // pred_fallthru
        _
    $region6: #{tpu_custom_call.1} parent=1 // loop_footer
      %s18 = sadd.s32 1, %s14
    $region7: #{tpu_custom_call.1} parent=1 // loop_footer_branch
      %13 = sbr.rel target = $region3
    $region8: #{tpu_custom_call.1} parent=1 // loop_exit
      _
    %269 = vsyncpa [#allocation3], 1
    %s270 = scalar_lea.sflag [#allocation3], 1
    %271 = vsyncpa %s270, 1
    %272 = vsyncpa [#allocation4], 1
    %s273 = scalar_lea.sflag [#allocation4], 1
    %274 = vsyncpa %s273, 1

</llo_original>
